<compile_context>
chip_gen: v5e
topology: v5e:2x2
jax: 0.10.0
libtpu: 0.0.40
codegen_flags: <defaults>
</compile_context>

<pallas_src>
import functools
import math

import jax
import jax.numpy as jnp
import numpy as np
from jax import lax
from jax.experimental import pallas as pl
from jax.experimental.pallas import tpu as pltpu


def _round_up(x, m):
    return ((x + m - 1) // m) * m


# ----------------------------------------------------------------------------
# Kernel 1: row-tiled linear  y = x @ w + b  (weights stay VMEM-resident)
# ----------------------------------------------------------------------------
def _linear_kernel(x_ref, w_ref, b_ref, o_ref):
    o_ref[...] = (
        jnp.dot(x_ref[...], w_ref[...], preferred_element_type=jnp.float32)
        + b_ref[...]
    )


def pallas_linear(x, w, b, *, tm=512):
    """x:(M,K) @ w:(K,O) + b:(O,) tiled over rows (TM≈512) so VMEM stays bounded
    at real sizes and the row axis shards across TensorCores (megacore)."""
    M, K = x.shape
    O = w.shape[1]
    TM = tm if M >= tm else _round_up(M, 8)
    Mp = _round_up(M, TM)
    if Mp != M:
        x = jnp.pad(x, ((0, Mp - M), (0, 0)))
    out = pl.pallas_call(
        _linear_kernel,
        out_shape=jax.ShapeDtypeStruct((Mp, O), jnp.float32),
        grid=(Mp // TM,),
        in_specs=[
            pl.BlockSpec((TM, K), lambda i: (i, 0)),
            pl.BlockSpec((K, O), lambda i: (0, 0)),   # constant -> stays resident
            pl.BlockSpec((1, O), lambda i: (0, 0)),
        ],
        out_specs=pl.BlockSpec((TM, O), lambda i: (i, 0)),
        compiler_params=pltpu.CompilerParams(
            dimension_semantics=("parallel",),
            vmem_limit_bytes=32 * 1024 * 1024),
        cost_estimate=pl.CostEstimate(
            flops=int(2 * Mp * K * O), transcendentals=0,
            bytes_accessed=int(4 * (Mp * K + K * O + Mp * O))),
    )(x, w, b.reshape(1, O))
    return out[:M] if Mp != M else out


# ----------------------------------------------------------------------------
# Kernel 2: deformable aggregation.
# Per (batch, query-tile, Lin-tile): build the sparse bilinear+attention tile
# A_h[q, s] = sum_k w[q, h, k] * (idx[q, h, k] == s) on the VPU (no HBM A, no
# scatter), then out[q, h*Dh:(h+1)*Dh] += A_h @ value_tile[:, h*Dh:(h+1)*Dh]
# on the MXU, accumulated over Lin tiles in VMEM scratch.
# ----------------------------------------------------------------------------
def _deform_agg_kernel(idx_ref, w_ref, v_ref, o_ref, acc_ref, *, n_heads, dh, K):
    li = pl.program_id(2)

    @pl.when(li == 0)
    def _init():
        acc_ref[...] = jnp.zeros_like(acc_ref)

    tq = acc_ref.shape[0]
    tlin = v_ref.shape[1]
    # global value-row ids covered by this Lin tile
    lin_ids = li * tlin + lax.broadcasted_iota(jnp.int32, (1, tlin), 1)  # (1, TLIN)

    idx = idx_ref[0]    # (TQ, H*K) int32  flattened value-row index per corner
    wgt = w_ref[0]      # (TQ, H*K) f32    attention * bilinear weight (0 if OOB)
    v = v_ref[0]        # (TLIN, C) f32    value rows for this tile, all heads

    head_outs = []
    for h in range(n_heads):
        a = jnp.zeros((tq, tlin), jnp.float32)
        for k in range(K):
            col = h * K + k
            hit = (idx[:, col:col + 1] == lin_ids).astype(jnp.float32)  # (TQ, TLIN)
            a = a + wgt[:, col:col + 1] * hit
        head_outs.append(jnp.dot(a, v[:, h * dh:(h + 1) * dh],
                                 preferred_element_type=jnp.float32))
    # single lane-dense (TQ, C) accumulator update (avoids narrow per-head stores)
    acc_ref[...] += jnp.concatenate(head_outs, axis=-1)

    @pl.when(li == pl.num_programs(2) - 1)
    def _done():
        o_ref[0] = acc_ref[...]


def pallas_deform_aggregate(idx, wgt, value, *, n_heads, K, tq=128, tlin=512):
    """idx/wgt: (N, Lq, H*K); value: (N, Lin, C)  ->  (N, Lq, C)."""
    N, Lq, HK = idx.shape
    _, Lin, C = value.shape
    Dh = C // n_heads

    TQ = tq if Lq >= tq else _round_up(Lq, 8)
    Lq_pad = _round_up(Lq, TQ)
    TLIN = tlin if Lin >= tlin else _round_up(Lin, 8)
    Lin_pad = _round_up(Lin, TLIN)

    if Lq_pad != Lq:
        idx = jnp.pad(idx, ((0, 0), (0, Lq_pad - Lq), (0, 0)))
        wgt = jnp.pad(wgt, ((0, 0), (0, Lq_pad - Lq), (0, 0)))
    if Lin_pad != Lin:
        value = jnp.pad(value, ((0, 0), (0, Lin_pad - Lin), (0, 0)))

    grid = (N, Lq_pad // TQ, Lin_pad // TLIN)
    kernel = functools.partial(_deform_agg_kernel, n_heads=n_heads, dh=Dh, K=K)

    flops = int(2 * N * Lq_pad * Lin_pad * (C + n_heads * K))
    bytes_accessed = int(4 * (2 * N * Lq_pad * HK
                              + N * Lin_pad * C * (Lq_pad // TQ)
                              + N * Lq_pad * C))

    out = pl.pallas_call(
        kernel,
        out_shape=jax.ShapeDtypeStruct((N, Lq_pad, C), jnp.float32),
        grid=grid,
        in_specs=[
            pl.BlockSpec((1, TQ, HK), lambda n, qi, li: (n, qi, 0)),
            pl.BlockSpec((1, TQ, HK), lambda n, qi, li: (n, qi, 0)),
            pl.BlockSpec((1, TLIN, C), lambda n, qi, li: (n, li, 0)),
        ],
        out_specs=pl.BlockSpec((1, TQ, C), lambda n, qi, li: (n, qi, 0)),
        scratch_shapes=[pltpu.VMEM((TQ, C), jnp.float32)],
        compiler_params=pltpu.CompilerParams(
            dimension_semantics=("parallel", "parallel", "arbitrary"),
            vmem_limit_bytes=32 * 1024 * 1024),
        cost_estimate=pl.CostEstimate(flops=flops, transcendentals=0,
                                      bytes_accessed=bytes_accessed),
    )(idx, wgt, value)
    return out[:, :Lq] if Lq_pad != Lq else out


# ----------------------------------------------------------------------------
# Glue: per-sample corner indices & combined (bilinear * attention) weights.
# Pure vectorized index math, no scatter, tiny (N*Lq*H*4*L*P elements).
# grid_sample(align_corners=False, padding_mode='zeros') semantics.
# ----------------------------------------------------------------------------
def compute_sampling_index_weight(loc, attn, spatial_shapes, level_start_index):
    # loc: (N, Lq, H, L, P, 2) normalized (x, y); attn: (N, Lq, H, L, P)
    N, Lq, H, L, P, _ = loc.shape
    idx_list, w_list = [], []
    for l in range(L):
        Hl, Wl = spatial_shapes[l]
        start = level_start_index[l]
        x = loc[:, :, :, l, :, 0] * Wl - 0.5        # (N, Lq, H, P)
        y = loc[:, :, :, l, :, 1] * Hl - 0.5
        x0 = jnp.floor(x)
        y0 = jnp.floor(y)
        lx = x - x0
        ly = y - y0
        x0i = x0.astype(jnp.int32)
        y0i = y0.astype(jnp.int32)
        aw = attn[:, :, :, l, :]
        for dx, dy, bw in [(0, 0, (1 - lx) * (1 - ly)), (1, 0, lx * (1 - ly)),
                           (0, 1, (1 - lx) * ly), (1, 1, lx * ly)]:
            xi = x0i + dx
            yi = y0i + dy
            valid = (xi >= 0) & (xi < Wl) & (yi >= 0) & (yi < Hl)
            idx_list.append(jnp.where(valid, start + yi * Wl + xi, 0))
            w_list.append(jnp.where(valid, bw * aw, 0.0))
    K = 4 * L * P
    idx = jnp.stack(idx_list, axis=-1).reshape(N, Lq, H, K).reshape(N, Lq, H * K)
    wgt = jnp.stack(w_list, axis=-1).reshape(N, Lq, H, K).reshape(N, Lq, H * K)
    return idx.astype(jnp.int32), wgt.astype(jnp.float32), K


# ----------------------------------------------------------------------------
# Parameters (mirrors MSDeformQAttn._reset_parameters, has_flow=False)
# ----------------------------------------------------------------------------
def init_params(key, d_model, n_levels, n_heads, n_points):
    k1, k2 = jax.random.split(key)

    def xavier(k, fan_in, fan_out):
        bound = math.sqrt(6.0 / (fan_in + fan_out))
        return jax.random.uniform(k, (fan_in, fan_out), jnp.float32, -bound, bound)

    thetas = jnp.arange(n_heads, dtype=jnp.float32) * (2.0 * math.pi / n_heads)
    grid = jnp.stack([jnp.cos(thetas), jnp.sin(thetas)], -1)
    grid = grid / jnp.max(jnp.abs(grid), axis=-1, keepdims=True)
    grid = jnp.tile(grid.reshape(n_heads, 1, 1, 2), (1, n_levels, n_points, 1))
    grid = grid * jnp.arange(1, n_points + 1, dtype=jnp.float32).reshape(1, 1, n_points, 1)

    return dict(
        w_off=jnp.zeros((d_model, n_heads * n_levels * n_points * 2), jnp.float32),
        b_off=grid.reshape(-1),
        w_attn=jnp.zeros((d_model, n_heads * n_levels * n_points), jnp.float32),
        b_attn=jnp.zeros((n_heads * n_levels * n_points,), jnp.float32),
        w_val=xavier(k1, d_model, d_model),
        b_val=jnp.zeros((d_model,), jnp.float32),
        w_out=xavier(k2, d_model, d_model),
        b_out=jnp.zeros((d_model,), jnp.float32),
    )


# ----------------------------------------------------------------------------
# Forward (flow=None, has_flow=False path)
# ----------------------------------------------------------------------------
def ms_deform_qattn_forward(params, query, reference_points, input_flatten,
                            spatial_shapes, level_start_index,
                            n_heads, n_levels, n_points,
                            input_padding_mask=None):
    N, Lq, C = query.shape
    _, Lin, _ = input_flatten.shape
    assert C % n_heads == 0
    assert sum(h * w for h, w in spatial_shapes) == Lin
    assert reference_points.shape[-1] == 2

    # value_proj (row-tiled Pallas matmul) + optional padding mask; value stays in
    # lane-dense (N, Lin, C) layout — the head split happens inside the agg kernel.
    value = pallas_linear(input_flatten.reshape(N * Lin, C),
                          params["w_val"], params["b_val"]).reshape(N, Lin, C)
    if input_padding_mask is not None:
        value = jnp.where(input_padding_mask[..., None], 0.0, value)

    # fused sampling_offsets + attention_weights projection (one query read)
    n_off = n_heads * n_levels * n_points * 2
    w_qp = jnp.concatenate([params["w_off"], params["w_attn"]], axis=1)
    b_qp = jnp.concatenate([params["b_off"], params["b_attn"]])
    qp = pallas_linear(query.reshape(N * Lq, C), w_qp, b_qp)
    sampling_offsets = qp[:, :n_off].reshape(N, Lq, n_heads, n_levels, n_points, 2)
    # TODO(synk): the reference flow=None branch never assigns `attention_weights`
    # (NameError in the checkpoint code); the canonical MSDeformAttn softmax path
    # over levels*points is used here intentionally.
    aw = qp[:, n_off:].reshape(N, Lq, n_heads, n_levels * n_points)
    aw = jax.nn.softmax(aw, axis=-1).reshape(N, Lq, n_heads, n_levels, n_points)

    # sampling locations (normalized, x=width, y=height)
    norm = jnp.array([[w, h] for (h, w) in spatial_shapes], jnp.float32)  # (L, 2)
    sampling_locations = (reference_points[:, :, None, :, None, :]
                          + sampling_offsets / norm[None, None, None, :, None, :])

    # sparse bilinear sample + attention reduction inside the Pallas kernel
    idx, wgt, K = compute_sampling_index_weight(
        sampling_locations, aw, spatial_shapes, level_start_index)
    out = pallas_deform_aggregate(idx, wgt, value, n_heads=n_heads, K=K)

    # output_proj (row-tiled Pallas matmul)
    out = pallas_linear(out.reshape(N * Lq, C), params["w_out"], params["b_out"])
    return out.reshape(N, Lq, C)


# ----------------------------------------------------------------------------
# Pure-JAX reference (independent gather-based bilinear sampling) for validation
# ----------------------------------------------------------------------------
def reference_forward(params, query, reference_points, input_flatten,
                      spatial_shapes, level_start_index,
                      n_heads, n_levels, n_points):
    N, Lq, C = query.shape
    _, Lin, _ = input_flatten.shape
    Dh = C // n_heads
    value = (input_flatten @ params["w_val"] + params["b_val"]).reshape(N, Lin, n_heads, Dh)
    off = (query @ params["w_off"] + params["b_off"]).reshape(N, Lq, n_heads, n_levels, n_points, 2)
    aw = (query @ params["w_attn"] + params["b_attn"]).reshape(N, Lq, n_heads, n_levels * n_points)
    aw = jax.nn.softmax(aw, -1).reshape(N, Lq, n_heads, n_levels, n_points)
    norm = jnp.array([[w, h] for (h, w) in spatial_shapes], jnp.float32)
    loc = reference_points[:, :, None, :, None, :] + off / norm[None, None, None, :, None, :]
    v_t = jnp.transpose(value, (0, 2, 1, 3))  # (N, H, Lin, Dh)
    out = jnp.zeros((N, n_heads, Lq, Dh), jnp.float32)
    for l in range(n_levels):
        Hl, Wl = spatial_shapes[l]
        start = level_start_index[l]
        x = loc[:, :, :, l, :, 0] * Wl - 0.5
        y = loc[:, :, :, l, :, 1] * Hl - 0.5
        x0 = jnp.floor(x)
        y0 = jnp.floor(y)
        lx = x - x0
        ly = y - y0
        x0i = x0.astype(jnp.int32)
        y0i = y0.astype(jnp.int32)
        for dx, dy, w in [(0, 0, (1 - lx) * (1 - ly)), (1, 0, lx * (1 - ly)),
                          (0, 1, (1 - lx) * ly), (1, 1, lx * ly)]:
            xi = x0i + dx
            yi = y0i + dy
            valid = (xi >= 0) & (xi < Wl) & (yi >= 0) & (yi < Hl)
            idx = jnp.where(valid, start + yi * Wl + xi, 0)          # (N, Lq, H, P)
            idx_t = jnp.transpose(idx, (0, 2, 1, 3))                 # (N, H, Lq, P)
            sampled = jax.vmap(jax.vmap(lambda v, i: v[i]))(v_t, idx_t)  # (N,H,Lq,P,Dh)
            ww = jnp.transpose(jnp.where(valid, w * aw[:, :, :, l, :], 0.0), (0, 2, 1, 3))
            out = out + (sampled * ww[..., None]).sum(axis=3)
    out = jnp.transpose(out, (0, 2, 1, 3)).reshape(N, Lq, C)
    return out @ params["w_out"] + params["b_out"]


# ----------------------------------------------------------------------------
if __name__ == "__main__":
    d_model, n_heads, n_levels, n_points = 32, 4, 2, 2
    spatial_shapes = [(8, 8), (4, 4)]                 # (H_l, W_l)
    level_start_index = [0, 64]
    N, Lq = 2, 16
    Lin = sum(h * w for h, w in spatial_shapes)       # 80

    key = jax.random.PRNGKey(0)
    k_q, k_in, k_ref, k_par = jax.random.split(key, 4)
    query = jax.random.normal(k_q, (N, Lq, d_model), jnp.float32)
    input_flatten = jax.random.normal(k_in, (N, Lin, d_model), jnp.float32)
    reference_points = jax.random.uniform(k_ref, (N, Lq, n_levels, 2), jnp.float32)
    params = init_params(k_par, d_model, n_levels, n_heads, n_points)

    out = ms_deform_qattn_forward(
        params, query, reference_points, input_flatten,
        spatial_shapes, level_start_index,
        n_heads=n_heads, n_levels=n_levels, n_points=n_points,
        input_padding_mask=None)
    out = jax.block_until_ready(out)
    assert out.shape == (N, Lq, d_model)

    ref = jax.block_until_ready(reference_forward(
        params, query, reference_points, input_flatten,
        spatial_shapes, level_start_index,
        n_heads=n_heads, n_levels=n_levels, n_points=n_points))
    max_err = float(jnp.max(jnp.abs(out - ref)))
    assert np.isfinite(max_err) and max_err < 5e-3, f"mismatch: {max_err}"

    print("KERNEL_OK")
</pallas_src>

<mosaic_0001>
module attributes {stable_mosaic.version = 11 : i64} {
  func.func @_linear_kernel(%arg0: i32, %arg1: memref<160x32xf32, #tpu.memory_space<vmem>>, %arg2: memref<32x32xf32, #tpu.memory_space<vmem>>, %arg3: memref<1x32xf32, #tpu.memory_space<vmem>>, %arg4: memref<160x32xf32, #tpu.memory_space<vmem>>) attributes {dimension_semantics = [#tpu.dimension_semantics<parallel>], iteration_bounds = array<i64: 1>, scalar_prefetch = 0 : i64, scratch_operands = 0 : i64, tpu.core_type = #tpu.core_type<tc>, window_params = [{transform_indices = @transform_0, window_bounds = array<i64: 160, 32>}, {pipeline_mode = #tpu.pipeline_mode<synchronous>, transform_indices = @transform_1, window_bounds = array<i64: 32, 32>}, {pipeline_mode = #tpu.pipeline_mode<synchronous>, transform_indices = @transform_2, window_bounds = array<i64: 1, 32>}, {transform_indices = @transform_3, window_bounds = array<i64: 160, 32>}]} {
    %c0 = arith.constant 0 : index
    %c0_0 = arith.constant 0 : index
    %0 = vector.load %arg1[%c0, %c0_0] : memref<160x32xf32, #tpu.memory_space<vmem>>, vector<160x32xf32>
    %c0_1 = arith.constant 0 : index
    %c0_2 = arith.constant 0 : index
    %1 = vector.load %arg2[%c0_1, %c0_2] : memref<32x32xf32, #tpu.memory_space<vmem>>, vector<32x32xf32>
    %cst = arith.constant dense<0.000000e+00> : vector<160x32xf32>
    %2 = tpu.matmul %0, %1, %cst {dimension_numbers = #tpu.dot_dimension_numbers<[1], [0], [0], [1], [0, 0, 1, 1], [], []>} : vector<160x32xf32>, vector<32x32xf32>, vector<160x32xf32> -> vector<160x32xf32>
    %c0_3 = arith.constant 0 : index
    %c0_4 = arith.constant 0 : index
    %3 = vector.load %arg3[%c0_3, %c0_4] : memref<1x32xf32, #tpu.memory_space<vmem>>, vector<1x32xf32>
    %4 = vector.broadcast %3 : vector<1x32xf32> to vector<160x32xf32>
    %5 = arith.addf %2, %4 : vector<160x32xf32>
    %c0_5 = arith.constant 0 : index
    %c0_6 = arith.constant 0 : index
    %6 = vector.load %arg4[%c0_5, %c0_6] : memref<160x32xf32, #tpu.memory_space<vmem>>, vector<160x32xf32>
    tpu.vector_store %arg4[%c0_5, %c0_6], %5 {strides = array<i32>} : memref<160x32xf32, #tpu.memory_space<vmem>>, vector<160x32xf32>,
    return
  }
  func.func @transform_0(%arg0: i32) -> (i32, i32) {
    %c0_i32 = arith.constant 0 : i32
    %c0_i32_0 = arith.constant 0 : i32
    return %arg0, %c0_i32 : i32, i32
  }
  func.func @transform_1(%arg0: i32) -> (i32, i32) {
    %c0_i32 = arith.constant 0 : i32
    %c0_i32_0 = arith.constant 0 : i32
    %c0_i32_1 = arith.constant 0 : i32
    return %c0_i32, %c0_i32_0 : i32, i32
  }
  func.func @transform_2(%arg0: i32) -> (i32, i32) {
    %c0_i32 = arith.constant 0 : i32
    %c0_i32_0 = arith.constant 0 : i32
    %c0_i32_1 = arith.constant 0 : i32
    return %c0_i32, %c0_i32_0 : i32, i32
  }
  func.func @transform_3(%arg0: i32) -> (i32, i32) {
    %c0_i32 = arith.constant 0 : i32
    %c0_i32_0 = arith.constant 0 : i32
    return %arg0, %c0_i32 : i32, i32
  }
}

</mosaic_0001>

<llo_original>
// kernel: tpu_custom_call.1
$region0: #{tpu_custom_call.1}
  #allocation0 [shape = 'u32[]', space=smem, size = 0x4, offset = 0x4, fixed_abs, tag = 'smem constant byte address 0x4 - core index']
  #allocation1 [shape = 'u32[72,128]{1,0:T(1,128)}', space=vmem, size = 0x9000, scoped, tag = 'internal scratch']
  %s0 = inlined_call_operand.vmem [shape: f32[160,32], index: 0, kind: input, shape index: {}]
  %s1 = inlined_call_operand.vmem [shape: f32[32,32], index: 1, kind: input, shape index: {}]
  %s2 = inlined_call_operand.vmem [shape: f32[1,32], index: 2, kind: input, shape index: {}]
  %s3 = inlined_call_operand.vmem [shape: f32[160,32], index: 3, kind: output, shape index: {}]
  %s4 = sld [smem:[#allocation0]]
  $region22: #{tpu_custom_call.1} parent=0
    _
  %s6 = ssub.s32 1, %s4
  %s7 = scalar_select 0, %s6, %s4
  // Predicated region
  $region2: #{tpu_custom_call.1} parent=0 // pred_check
    _
  $region3: #{tpu_custom_call.1} parent=0 // pred_check_branch
    %9 = sbr.rel (0) target = $region5
  $region4: #{tpu_custom_call.1} parent=0 // pred_region
    _
  $region5: #{tpu_custom_call.1} parent=0 // pred_fallthru
    _
  // Predicated region
  $region6: #{tpu_custom_call.1} parent=0 // pred_check
    _
  $region7: #{tpu_custom_call.1} parent=0 // pred_check_branch
    %11 = sbr.rel (0) target = $region9
  $region8: #{tpu_custom_call.1} parent=0 // pred_region
    _
  $region9: #{tpu_custom_call.1} parent=0 // pred_fallthru
    _
  // Predicated region
  $region10: #{tpu_custom_call.1} parent=0 // pred_check
    _
  $region11: #{tpu_custom_call.1} parent=0 // pred_check_branch
    %13 = sbr.rel (0) target = $region13
  $region12: #{tpu_custom_call.1} parent=0 // pred_region
    _
  $region13: #{tpu_custom_call.1} parent=0 // pred_fallthru
    _
  %v14 = vld [vmem:[%s0] sm:$0xff]
  %v15 = vld [vmem:[%s0 + $0x8] sm:$0xff]
  %v16 = vld [vmem:[%s0 + $0x10] sm:$0xff]
  %v17 = vld [vmem:[%s0 + $0x18] sm:$0xff]
  %v18 = vld [vmem:[%s0 + $0x20] sm:$0xff]
  %v19 = vld [vmem:[%s0 + $0x28] sm:$0xff]
  %v20 = vld [vmem:[%s0 + $0x30] sm:$0xff]
  %v21 = vld [vmem:[%s0 + $0x38] sm:$0xff]
  %v22 = vld [vmem:[%s0 + $0x40] sm:$0xff]
  %v23 = vld [vmem:[%s0 + $0x48] sm:$0xff]
  %v24 = vld [vmem:[%s0 + $0x50] sm:$0xff]
  %v25 = vld [vmem:[%s0 + $0x58] sm:$0xff]
  %v26 = vld [vmem:[%s0 + $0x60] sm:$0xff]
  %v27 = vld [vmem:[%s0 + $0x68] sm:$0xff]
  %v28 = vld [vmem:[%s0 + $0x70] sm:$0xff]
  %v29 = vld [vmem:[%s0 + $0x78] sm:$0xff]
  %v30 = vld [vmem:[%s0 + $0x80] sm:$0xff]
  %v31 = vld [vmem:[%s0 + $0x88] sm:$0xff]
  %v32 = vld [vmem:[%s0 + $0x90] sm:$0xff]
  %v33 = vld [vmem:[%s0 + $0x98] sm:$0xff]
  %v34 = vld [vmem:[%s1] sm:$0xff]
  %v35 = vld [vmem:[%s1 + $0x8] sm:$0xff]
  %v36 = vld [vmem:[%s1 + $0x10] sm:$0xff]
  %v37 = vld [vmem:[%s1 + $0x18] sm:$0xff]
  %v38 = vld [vmem:[%s2] sm:$0x1]
  %v40 = vperm.slane %v38, 0
  %vm42 = vcmask 261120
  %v44 = vsel %vm42, %v14, 0
  %v47 = vsel %vm42, %v15, 0
  %v50 = vsel %vm42, %v16, 0
  %v53 = vsel %vm42, %v17, 0
  %v56 = vsel %vm42, %v18, 0
  %v59 = vsel %vm42, %v19, 0
  %v62 = vsel %vm42, %v20, 0
  %v65 = vsel %vm42, %v21, 0
  %v68 = vsel %vm42, %v22, 0
  %v71 = vsel %vm42, %v23, 0
  %v74 = vsel %vm42, %v24, 0
  %v77 = vsel %vm42, %v25, 0
  %v80 = vsel %vm42, %v26, 0
  %v83 = vsel %vm42, %v27, 0
  %v86 = vsel %vm42, %v28, 0
  %v89 = vsel %vm42, %v29, 0
  %v92 = vsel %vm42, %v30, 0
  %v95 = vsel %vm42, %v31, 0
  %v98 = vsel %vm42, %v32, 0
  %v101 = vsel %vm42, %v33, 0
  %103 = vmatpush.msra.mxu0 0.0
  %104 = vmatpush.msra.mxu0 0.0
  %105 = vmatpush.msra.mxu0 0.0
  %106 = vmatpush.msra.mxu0 0.0
  %107 = vmatpush.msra.mxu0 0.0
  %108 = vmatpush.msra.mxu0 0.0
  %109 = vmatpush.msra.mxu0 0.0
  %110 = vmatpush.msra.mxu0 0.0
  %111 = vmatpush.msra.mxu0 0.0
  %112 = vmatpush.msra.mxu0 0.0
  %113 = vmatpush.msra.mxu0 0.0
  %114 = vmatpush.msra.mxu0 0.0
  %115 = vmatpush.msra.mxu0 %v37
  %116 = vmatpush.msra.mxu0 %v36
  %117 = vmatpush.msra.mxu0 %v35
  %118 = vmatpush.msra.mxu0 %v34
  %119 = vmatmul.f32.gmra.mxu0 %v44
  %v120 = vpop.f32.mrf.mxu0
  %v121 = vadd.f32 %v40, %v120
  %122 = vmatmul.f32.gmra.mxu0 %v47
  %v123 = vpop.f32.mrf.mxu0
  %v124 = vadd.f32 %v40, %v123
  %125 = vmatmul.f32.gmra.mxu0 %v50
  %v126 = vpop.f32.mrf.mxu0
  %v127 = vadd.f32 %v40, %v126
  %128 = vmatmul.f32.gmra.mxu0 %v53
  %v129 = vpop.f32.mrf.mxu0
  %v130 = vadd.f32 %v40, %v129
  %131 = vmatmul.f32.gmra.mxu0 %v56
  %v132 = vpop.f32.mrf.mxu0
  %v133 = vadd.f32 %v40, %v132
  %134 = vmatmul.f32.gmra.mxu0 %v59
  %v135 = vpop.f32.mrf.mxu0
  %v136 = vadd.f32 %v40, %v135
  %137 = vmatmul.f32.gmra.mxu0 %v62
  %v138 = vpop.f32.mrf.mxu0
  %v139 = vadd.f32 %v40, %v138
  %140 = vmatmul.f32.gmra.mxu0 %v65
  %v141 = vpop.f32.mrf.mxu0
  %v142 = vadd.f32 %v40, %v141
  %143 = vmatmul.f32.gmra.mxu0 %v68
  %v144 = vpop.f32.mrf.mxu0
  %v145 = vadd.f32 %v40, %v144
  %146 = vmatmul.f32.gmra.mxu0 %v71
  %v147 = vpop.f32.mrf.mxu0
  %v148 = vadd.f32 %v40, %v147
  %149 = vmatmul.f32.gmra.mxu0 %v74
  %v150 = vpop.f32.mrf.mxu0
  %v151 = vadd.f32 %v40, %v150
  %152 = vmatmul.f32.gmra.mxu0 %v77
  %v153 = vpop.f32.mrf.mxu0
  %v154 = vadd.f32 %v40, %v153
  %155 = vmatmul.f32.gmra.mxu0 %v80
  %v156 = vpop.f32.mrf.mxu0
  %v157 = vadd.f32 %v40, %v156
  %158 = vmatmul.f32.gmra.mxu0 %v83
  %v159 = vpop.f32.mrf.mxu0
  %v160 = vadd.f32 %v40, %v159
  %161 = vmatmul.f32.gmra.mxu0 %v86
  %v162 = vpop.f32.mrf.mxu0
  %v163 = vadd.f32 %v40, %v162
  %164 = vmatmul.f32.gmra.mxu0 %v89
  %v165 = vpop.f32.mrf.mxu0
  %v166 = vadd.f32 %v40, %v165
  %167 = vmatmul.f32.gmra.mxu0 %v92
  %v168 = vpop.f32.mrf.mxu0
  %v169 = vadd.f32 %v40, %v168
  %170 = vmatmul.f32.gmra.mxu0 %v95
  %v171 = vpop.f32.mrf.mxu0
  %v172 = vadd.f32 %v40, %v171
  %173 = vmatmul.f32.gmra.mxu0 %v98
  %v174 = vpop.f32.mrf.mxu0
  %v175 = vadd.f32 %v40, %v174
  %176 = vmatmul.f32.gmra.mxu0 %v101
  %v177 = vpop.f32.mrf.mxu0
  %v178 = vadd.f32 %v40, %v177
  %179 = vdwg.mxu0
  %180 = vst.msk [vmem:[%s3] sm:$0xff] %vm42, %v121
  %181 = vst.msk [vmem:[%s3 + $0x8] sm:$0xff] %vm42, %v124
  %182 = vst.msk [vmem:[%s3 + $0x10] sm:$0xff] %vm42, %v127
  %183 = vst.msk [vmem:[%s3 + $0x18] sm:$0xff] %vm42, %v130
  %184 = vst.msk [vmem:[%s3 + $0x20] sm:$0xff] %vm42, %v133
  %185 = vst.msk [vmem:[%s3 + $0x28] sm:$0xff] %vm42, %v136
  %186 = vst.msk [vmem:[%s3 + $0x30] sm:$0xff] %vm42, %v139
  %187 = vst.msk [vmem:[%s3 + $0x38] sm:$0xff] %vm42, %v142
  %188 = vst.msk [vmem:[%s3 + $0x40] sm:$0xff] %vm42, %v145
  %189 = vst.msk [vmem:[%s3 + $0x48] sm:$0xff] %vm42, %v148
  %190 = vst.msk [vmem:[%s3 + $0x50] sm:$0xff] %vm42, %v151
  %191 = vst.msk [vmem:[%s3 + $0x58] sm:$0xff] %vm42, %v154
  %192 = vst.msk [vmem:[%s3 + $0x60] sm:$0xff] %vm42, %v157
  %193 = vst.msk [vmem:[%s3 + $0x68] sm:$0xff] %vm42, %v160
  %194 = vst.msk [vmem:[%s3 + $0x70] sm:$0xff] %vm42, %v163
  %195 = vst.msk [vmem:[%s3 + $0x78] sm:$0xff] %vm42, %v166
  %196 = vst.msk [vmem:[%s3 + $0x80] sm:$0xff] %vm42, %v169
  %197 = vst.msk [vmem:[%s3 + $0x88] sm:$0xff] %vm42, %v172
  %198 = vst.msk [vmem:[%s3 + $0x90] sm:$0xff] %vm42, %v175
  %199 = vst.msk [vmem:[%s3 + $0x98] sm:$0xff] %vm42, %v178
  // Predicated region
  $region14: #{tpu_custom_call.1} parent=0 // pred_check
    _
  $region15: #{tpu_custom_call.1} parent=0 // pred_check_branch
    %201 = sbr.rel (0) target = $region17
  $region16: #{tpu_custom_call.1} parent=0 // pred_region
    _
  $region17: #{tpu_custom_call.1} parent=0 // pred_fallthru
    _
  // Predicated region
  $region18: #{tpu_custom_call.1} parent=0 // pred_check
    _
  $region19: #{tpu_custom_call.1} parent=0 // pred_check_branch
    %203 = sbr.rel (0) target = $region21
  $region20: #{tpu_custom_call.1} parent=0 // pred_region
    _
  $region21: #{tpu_custom_call.1} parent=0 // pred_fallthru
    _

</llo_original>
